<compile_context>
chip_gen: v6e
topology: v6e:2x2x1
jax: 0.10.0
libtpu: 0.0.40
codegen_flags: <defaults>
</compile_context>

<pallas_src>
import functools

import jax
import jax.numpy as jnp
from jax.experimental import pallas as pl
from jax.experimental.pallas import tpu as pltpu


def _edge_kernel(x_ref, w_ref, o_ref, *, cin, cout, kh, kw, out_h, out_w, wp):
    """One image per grid step; input channels packed along the lane axis.

    x_ref: (1, Hp, Cin*Wp + KW-1)  f32 zero-padded, channel-packed image (VMEM)
    w_ref: (Cout*KH*KW, Cin*Wp)    f32 lane-broadcast filter table (VMEM)
    o_ref: (1, H, W)               f32 clipped mode-0 result (byte cast is glue)
    """
    cw = cin * wp
    plane = x_ref[0]                                  # (Hp, Cin*Wp + KW-1)

    # Cout live accumulators; taps (dy, dx) outermost so each shifted patch is
    # materialized exactly once and reused across all output channels.
    accs = [jnp.zeros((out_h, cw), jnp.float32) for _ in range(cout)]
    for dy in range(kh):
        rows = plane[dy:dy + out_h, :]                # sublane slice, hoisted
        for dx in range(kw):
            patch = rows[:, dx:dx + cw]               # one lane shift per (dy,dx)
            for oc in range(cout):
                t = (oc * kh + dy) * kw + dx
                wrow = w_ref[pl.ds(t, 1), :]          # (1, Cin*Wp) vector weights
                accs[oc] = accs[oc] + wrow * patch

    # Per output channel: reduce the Cin lane blocks, then mode-0 postprocess
    # (sum over channels of |conv|), crop the KW-1 junk columns, clip.
    res = None
    for oc in range(cout):
        conv = accs[oc][:, 0:wp]
        for ic in range(1, cin):
            conv = conv + accs[oc][:, ic * wp:(ic + 1) * wp]
        a = jnp.abs(conv)
        res = a if res is None else res + a

    o_ref[0] = jnp.clip(res[:, :out_w], 0.0, 255.0)


def edge_op(images_nchw, kernel_ocihw, mode=0):
    """EdgeOP.forward for mode == 0 (the default).  Returns uint8 (N, H, W)."""
    if mode != 0:
        # TODO(synk): modes 1-4 (L2 / max / weighted / per-channel) not
        # implemented; modes 2 and 3 are broken in the reference anyway.
        raise NotImplementedError("only mode=0 is implemented")

    n, cin, h, w = images_nchw.shape
    cout, cin2, kh, kw = kernel_ocihw.shape
    assert cin == cin2, "in_channels mismatch"

    # PyTorch padding='same' (stride=1): begin = total//2, end = total - begin
    pad_h, pad_w = kh - 1, kw - 1
    pt, pb = pad_h // 2, pad_h - pad_h // 2
    plft, prt = pad_w // 2, pad_w - pad_w // 2
    hp, wp = h + pad_h, w + pad_w
    cw = cin * wp

    # Layout plumbing (plain XLA): pad each channel plane, pack the Cin planes
    # side by side along the lane axis, and add KW-1 spare lanes so every dx
    # shift in the kernel is an in-range static slice.
    xp = jnp.pad(images_nchw.astype(jnp.float32),
                 ((0, 0), (0, 0), (pt, pb), (plft, prt)))       # (N, C, Hp, Wp)
    xpk = xp.transpose(0, 2, 1, 3).reshape(n, hp, cw)           # (N, Hp, C*Wp)
    xpk = jnp.pad(xpk, ((0, 0), (0, 0), (0, kw - 1)))           # (N, Hp, C*Wp+KW-1)

    # Lane-broadcast weights: wtab[(oc*KH+dy)*KW+dx, ic*Wp + x] = W[oc, ic, dy, dx]
    wtab = jnp.repeat(
        kernel_ocihw.astype(jnp.float32).transpose(0, 2, 3, 1),  # (Cout,KH,KW,Cin)
        wp, axis=-1).reshape(cout * kh * kw, cw)                 # (taps, Cin*Wp)

    kern = functools.partial(_edge_kernel, cin=cin, cout=cout, kh=kh, kw=kw,
                             out_h=h, out_w=w, wp=wp)

    out_f32 = pl.pallas_call(
        kern,
        out_shape=jax.ShapeDtypeStruct((n, h, w), jnp.float32),
        grid=(n,),
        in_specs=[
            # one packed padded image per grid step (last two dims = full extents)
            pl.BlockSpec((1, hp, cw + kw - 1), lambda i: (i, 0, 0)),
            # small weight table, same block every step (stays resident in VMEM)
            pl.BlockSpec((cout * kh * kw, cw), lambda i: (0, 0)),
        ],
        out_specs=pl.BlockSpec((1, h, w), lambda i: (i, 0, 0)),
        compiler_params=pltpu.CompilerParams(
            dimension_semantics=("parallel",)),   # batch axis -> both v7x TCs
    )(xpk, wtab)

    # torch.clip(...).byte(): values already in [0, 255]; truncating cast
    return out_f32.astype(jnp.uint8)


if __name__ == "__main__":
    key = jax.random.PRNGKey(0)
    k_img, k_w = jax.random.split(key)

    # Deterministic inputs consistent with the module:
    #   images: NCHW, kernel bank: (out_channels, in_channels, kh, kw)
    images = jax.random.uniform(k_img, (2, 4, 16, 16), jnp.float32,
                                minval=0.0, maxval=255.0)
    kernel = jax.random.normal(k_w, (4, 4, 3, 3), jnp.float32)

    out = edge_op(images, kernel, mode=0)
    out = jax.block_until_ready(out)

    assert out.shape == (2, 16, 16), out.shape
    assert out.dtype == jnp.uint8, out.dtype

    # Cross-check against a pure-JAX reference (f32-precision conv), allowing
    # off-by-one from float truncation at integer boundaries.
    dn = jax.lax.conv_dimension_numbers(images.shape, kernel.shape,
                                        ('NCHW', 'OIHW', 'NCHW'))
    conv = jax.lax.conv_general_dilated(images, kernel, (1, 1), 'SAME',
                                        dimension_numbers=dn,
                                        precision=jax.lax.Precision.HIGHEST)
    ref = jnp.clip(jnp.sum(jnp.abs(conv), axis=1), 0, 255).astype(jnp.uint8)
    max_err = int(jnp.max(jnp.abs(out.astype(jnp.int32) - ref.astype(jnp.int32))))
    assert max_err <= 1, max_err

    print("KERNEL_OK")
</pallas_src>

<mosaic_0001>
module attributes {stable_mosaic.version = 11 : i64} {
  func.func @_edge_kernel(%arg0: i32, %arg1: memref<1x18x74xf32, #tpu.memory_space<vmem>>, %arg2: memref<36x72xf32, #tpu.memory_space<vmem>>, %arg3: memref<1x16x16xf32, #tpu.memory_space<vmem>>) attributes {dimension_semantics = [#tpu.dimension_semantics<parallel>], iteration_bounds = array<i64: 2>, scalar_prefetch = 0 : i64, scratch_operands = 0 : i64, tpu.core_type = #tpu.core_type<tc>, window_params = [{transform_indices = @transform_0, window_bounds = array<i64: 1, 18, 74>}, {pipeline_mode = #tpu.pipeline_mode<synchronous>, transform_indices = @transform_1, window_bounds = array<i64: 36, 72>}, {transform_indices = @transform_2, window_bounds = array<i64: 1, 16, 16>}]} {
    %c0 = arith.constant 0 : index
    %c0_0 = arith.constant 0 : index
    %c0_1 = arith.constant 0 : index
    %0 = vector.load %arg1[%c0, %c0_0, %c0_1] : memref<1x18x74xf32, #tpu.memory_space<vmem>>, vector<1x18x74xf32>
    %1 = vector.shape_cast %0 : vector<1x18x74xf32> to vector<18x74xf32>
    %cst = arith.constant 0.000000e+00 : f32
    %2 = vector.broadcast %cst : f32 to vector<16x72xf32>
    %cst_2 = arith.constant 0.000000e+00 : f32
    %3 = vector.broadcast %cst_2 : f32 to vector<16x72xf32>
    %cst_3 = arith.constant 0.000000e+00 : f32
    %4 = vector.broadcast %cst_3 : f32 to vector<16x72xf32>
    %cst_4 = arith.constant 0.000000e+00 : f32
    %5 = vector.broadcast %cst_4 : f32 to vector<16x72xf32>
    %6 = vector.extract_strided_slice %1 {offsets = [0, 0], sizes = [16, 74], strides = [1, 1]} : vector<18x74xf32> to vector<16x74xf32>
    %7 = vector.extract_strided_slice %6 {offsets = [0, 0], sizes = [16, 72], strides = [1, 1]} : vector<16x74xf32> to vector<16x72xf32>
    %c0_5 = arith.constant 0 : index
    %c0_6 = arith.constant 0 : index
    %8 = vector.load %arg2[%c0_5, %c0_6] : memref<36x72xf32, #tpu.memory_space<vmem>>, vector<1x72xf32>
    %9 = vector.broadcast %8 : vector<1x72xf32> to vector<16x72xf32>
    %10 = arith.mulf %9, %7 : vector<16x72xf32>
    %11 = arith.addf %2, %10 : vector<16x72xf32>
    %c9 = arith.constant 9 : index
    %c0_7 = arith.constant 0 : index
    %12 = vector.load %arg2[%c9, %c0_7] : memref<36x72xf32, #tpu.memory_space<vmem>>, vector<1x72xf32>
    %13 = vector.broadcast %12 : vector<1x72xf32> to vector<16x72xf32>
    %14 = arith.mulf %13, %7 : vector<16x72xf32>
    %15 = arith.addf %3, %14 : vector<16x72xf32>
    %c18 = arith.constant 18 : index
    %c0_8 = arith.constant 0 : index
    %16 = vector.load %arg2[%c18, %c0_8] : memref<36x72xf32, #tpu.memory_space<vmem>>, vector<1x72xf32>
    %17 = vector.broadcast %16 : vector<1x72xf32> to vector<16x72xf32>
    %18 = arith.mulf %17, %7 : vector<16x72xf32>
    %19 = arith.addf %4, %18 : vector<16x72xf32>
    %c27 = arith.constant 27 : index
    %c0_9 = arith.constant 0 : index
    %20 = vector.load %arg2[%c27, %c0_9] : memref<36x72xf32, #tpu.memory_space<vmem>>, vector<1x72xf32>
    %21 = vector.broadcast %20 : vector<1x72xf32> to vector<16x72xf32>
    %22 = arith.mulf %21, %7 : vector<16x72xf32>
    %23 = arith.addf %5, %22 : vector<16x72xf32>
    %24 = vector.extract_strided_slice %6 {offsets = [0, 1], sizes = [16, 72], strides = [1, 1]} : vector<16x74xf32> to vector<16x72xf32>
    %c1 = arith.constant 1 : index
    %c0_10 = arith.constant 0 : index
    %25 = vector.load %arg2[%c1, %c0_10] : memref<36x72xf32, #tpu.memory_space<vmem>>, vector<1x72xf32>
    %26 = vector.broadcast %25 : vector<1x72xf32> to vector<16x72xf32>
    %27 = arith.mulf %26, %24 : vector<16x72xf32>
    %28 = arith.addf %11, %27 : vector<16x72xf32>
    %c10 = arith.constant 10 : index
    %c0_11 = arith.constant 0 : index
    %29 = vector.load %arg2[%c10, %c0_11] : memref<36x72xf32, #tpu.memory_space<vmem>>, vector<1x72xf32>
    %30 = vector.broadcast %29 : vector<1x72xf32> to vector<16x72xf32>
    %31 = arith.mulf %30, %24 : vector<16x72xf32>
    %32 = arith.addf %15, %31 : vector<16x72xf32>
    %c19 = arith.constant 19 : index
    %c0_12 = arith.constant 0 : index
    %33 = vector.load %arg2[%c19, %c0_12] : memref<36x72xf32, #tpu.memory_space<vmem>>, vector<1x72xf32>
    %34 = vector.broadcast %33 : vector<1x72xf32> to vector<16x72xf32>
    %35 = arith.mulf %34, %24 : vector<16x72xf32>
    %36 = arith.addf %19, %35 : vector<16x72xf32>
    %c28 = arith.constant 28 : index
    %c0_13 = arith.constant 0 : index
    %37 = vector.load %arg2[%c28, %c0_13] : memref<36x72xf32, #tpu.memory_space<vmem>>, vector<1x72xf32>
    %38 = vector.broadcast %37 : vector<1x72xf32> to vector<16x72xf32>
    %39 = arith.mulf %38, %24 : vector<16x72xf32>
    %40 = arith.addf %23, %39 : vector<16x72xf32>
    %41 = vector.extract_strided_slice %6 {offsets = [0, 2], sizes = [16, 72], strides = [1, 1]} : vector<16x74xf32> to vector<16x72xf32>
    %c2 = arith.constant 2 : index
    %c0_14 = arith.constant 0 : index
    %42 = vector.load %arg2[%c2, %c0_14] : memref<36x72xf32, #tpu.memory_space<vmem>>, vector<1x72xf32>
    %43 = vector.broadcast %42 : vector<1x72xf32> to vector<16x72xf32>
    %44 = arith.mulf %43, %41 : vector<16x72xf32>
    %45 = arith.addf %28, %44 : vector<16x72xf32>
    %c11 = arith.constant 11 : index
    %c0_15 = arith.constant 0 : index
    %46 = vector.load %arg2[%c11, %c0_15] : memref<36x72xf32, #tpu.memory_space<vmem>>, vector<1x72xf32>
    %47 = vector.broadcast %46 : vector<1x72xf32> to vector<16x72xf32>
    %48 = arith.mulf %47, %41 : vector<16x72xf32>
    %49 = arith.addf %32, %48 : vector<16x72xf32>
    %c20 = arith.constant 20 : index
    %c0_16 = arith.constant 0 : index
    %50 = vector.load %arg2[%c20, %c0_16] : memref<36x72xf32, #tpu.memory_space<vmem>>, vector<1x72xf32>
    %51 = vector.broadcast %50 : vector<1x72xf32> to vector<16x72xf32>
    %52 = arith.mulf %51, %41 : vector<16x72xf32>
    %53 = arith.addf %36, %52 : vector<16x72xf32>
    %c29 = arith.constant 29 : index
    %c0_17 = arith.constant 0 : index
    %54 = vector.load %arg2[%c29, %c0_17] : memref<36x72xf32, #tpu.memory_space<vmem>>, vector<1x72xf32>
    %55 = vector.broadcast %54 : vector<1x72xf32> to vector<16x72xf32>
    %56 = arith.mulf %55, %41 : vector<16x72xf32>
    %57 = arith.addf %40, %56 : vector<16x72xf32>
    %58 = vector.extract_strided_slice %1 {offsets = [1, 0], sizes = [16, 74], strides = [1, 1]} : vector<18x74xf32> to vector<16x74xf32>
    %59 = vector.extract_strided_slice %58 {offsets = [0, 0], sizes = [16, 72], strides = [1, 1]} : vector<16x74xf32> to vector<16x72xf32>
    %c3 = arith.constant 3 : index
    %c0_18 = arith.constant 0 : index
    %60 = vector.load %arg2[%c3, %c0_18] : memref<36x72xf32, #tpu.memory_space<vmem>>, vector<1x72xf32>
    %61 = vector.broadcast %60 : vector<1x72xf32> to vector<16x72xf32>
    %62 = arith.mulf %61, %59 : vector<16x72xf32>
    %63 = arith.addf %45, %62 : vector<16x72xf32>
    %c12 = arith.constant 12 : index
    %c0_19 = arith.constant 0 : index
    %64 = vector.load %arg2[%c12, %c0_19] : memref<36x72xf32, #tpu.memory_space<vmem>>, vector<1x72xf32>
    %65 = vector.broadcast %64 : vector<1x72xf32> to vector<16x72xf32>
    %66 = arith.mulf %65, %59 : vector<16x72xf32>
    %67 = arith.addf %49, %66 : vector<16x72xf32>
    %c21 = arith.constant 21 : index
    %c0_20 = arith.constant 0 : index
    %68 = vector.load %arg2[%c21, %c0_20] : memref<36x72xf32, #tpu.memory_space<vmem>>, vector<1x72xf32>
    %69 = vector.broadcast %68 : vector<1x72xf32> to vector<16x72xf32>
    %70 = arith.mulf %69, %59 : vector<16x72xf32>
    %71 = arith.addf %53, %70 : vector<16x72xf32>
    %c30 = arith.constant 30 : index
    %c0_21 = arith.constant 0 : index
    %72 = vector.load %arg2[%c30, %c0_21] : memref<36x72xf32, #tpu.memory_space<vmem>>, vector<1x72xf32>
    %73 = vector.broadcast %72 : vector<1x72xf32> to vector<16x72xf32>
    %74 = arith.mulf %73, %59 : vector<16x72xf32>
    %75 = arith.addf %57, %74 : vector<16x72xf32>
    %76 = vector.extract_strided_slice %58 {offsets = [0, 1], sizes = [16, 72], strides = [1, 1]} : vector<16x74xf32> to vector<16x72xf32>
    %c4 = arith.constant 4 : index
    %c0_22 = arith.constant 0 : index
    %77 = vector.load %arg2[%c4, %c0_22] : memref<36x72xf32, #tpu.memory_space<vmem>>, vector<1x72xf32>
    %78 = vector.broadcast %77 : vector<1x72xf32> to vector<16x72xf32>
    %79 = arith.mulf %78, %76 : vector<16x72xf32>
    %80 = arith.addf %63, %79 : vector<16x72xf32>
    %c13 = arith.constant 13 : index
    %c0_23 = arith.constant 0 : index
    %81 = vector.load %arg2[%c13, %c0_23] : memref<36x72xf32, #tpu.memory_space<vmem>>, vector<1x72xf32>
    %82 = vector.broadcast %81 : vector<1x72xf32> to vector<16x72xf32>
    %83 = arith.mulf %82, %76 : vector<16x72xf32>
    %84 = arith.addf %67, %83 : vector<16x72xf32>
    %c22 = arith.constant 22 : index
    %c0_24 = arith.constant 0 : index
    %85 = vector.load %arg2[%c22, %c0_24] : memref<36x72xf32, #tpu.memory_space<vmem>>, vector<1x72xf32>
    %86 = vector.broadcast %85 : vector<1x72xf32> to vector<16x72xf32>
    %87 = arith.mulf %86, %76 : vector<16x72xf32>
    %88 = arith.addf %71, %87 : vector<16x72xf32>
    %c31 = arith.constant 31 : index
    %c0_25 = arith.constant 0 : index
    %89 = vector.load %arg2[%c31, %c0_25] : memref<36x72xf32, #tpu.memory_space<vmem>>, vector<1x72xf32>
    %90 = vector.broadcast %89 : vector<1x72xf32> to vector<16x72xf32>
    %91 = arith.mulf %90, %76 : vector<16x72xf32>
    %92 = arith.addf %75, %91 : vector<16x72xf32>
    %93 = vector.extract_strided_slice %58 {offsets = [0, 2], sizes = [16, 72], strides = [1, 1]} : vector<16x74xf32> to vector<16x72xf32>
    %c5 = arith.constant 5 : index
    %c0_26 = arith.constant 0 : index
    %94 = vector.load %arg2[%c5, %c0_26] : memref<36x72xf32, #tpu.memory_space<vmem>>, vector<1x72xf32>
    %95 = vector.broadcast %94 : vector<1x72xf32> to vector<16x72xf32>
    %96 = arith.mulf %95, %93 : vector<16x72xf32>
    %97 = arith.addf %80, %96 : vector<16x72xf32>
    %c14 = arith.constant 14 : index
    %c0_27 = arith.constant 0 : index
    %98 = vector.load %arg2[%c14, %c0_27] : memref<36x72xf32, #tpu.memory_space<vmem>>, vector<1x72xf32>
    %99 = vector.broadcast %98 : vector<1x72xf32> to vector<16x72xf32>
    %100 = arith.mulf %99, %93 : vector<16x72xf32>
    %101 = arith.addf %84, %100 : vector<16x72xf32>
    %c23 = arith.constant 23 : index
    %c0_28 = arith.constant 0 : index
    %102 = vector.load %arg2[%c23, %c0_28] : memref<36x72xf32, #tpu.memory_space<vmem>>, vector<1x72xf32>
    %103 = vector.broadcast %102 : vector<1x72xf32> to vector<16x72xf32>
    %104 = arith.mulf %103, %93 : vector<16x72xf32>
    %105 = arith.addf %88, %104 : vector<16x72xf32>
    %c32 = arith.constant 32 : index
    %c0_29 = arith.constant 0 : index
    %106 = vector.load %arg2[%c32, %c0_29] : memref<36x72xf32, #tpu.memory_space<vmem>>, vector<1x72xf32>
    %107 = vector.broadcast %106 : vector<1x72xf32> to vector<16x72xf32>
    %108 = arith.mulf %107, %93 : vector<16x72xf32>
    %109 = arith.addf %92, %108 : vector<16x72xf32>
    %110 = vector.extract_strided_slice %1 {offsets = [2, 0], sizes = [16, 74], strides = [1, 1]} : vector<18x74xf32> to vector<16x74xf32>
    %111 = vector.extract_strided_slice %110 {offsets = [0, 0], sizes = [16, 72], strides = [1, 1]} : vector<16x74xf32> to vector<16x72xf32>
    %c6 = arith.constant 6 : index
    %c0_30 = arith.constant 0 : index
    %112 = vector.load %arg2[%c6, %c0_30] : memref<36x72xf32, #tpu.memory_space<vmem>>, vector<1x72xf32>
    %113 = vector.broadcast %112 : vector<1x72xf32> to vector<16x72xf32>
    %114 = arith.mulf %113, %111 : vector<16x72xf32>
    %115 = arith.addf %97, %114 : vector<16x72xf32>
    %c15 = arith.constant 15 : index
    %c0_31 = arith.constant 0 : index
    %116 = vector.load %arg2[%c15, %c0_31] : memref<36x72xf32, #tpu.memory_space<vmem>>, vector<1x72xf32>
    %117 = vector.broadcast %116 : vector<1x72xf32> to vector<16x72xf32>
    %118 = arith.mulf %117, %111 : vector<16x72xf32>
    %119 = arith.addf %101, %118 : vector<16x72xf32>
    %c24 = arith.constant 24 : index
    %c0_32 = arith.constant 0 : index
    %120 = vector.load %arg2[%c24, %c0_32] : memref<36x72xf32, #tpu.memory_space<vmem>>, vector<1x72xf32>
    %121 = vector.broadcast %120 : vector<1x72xf32> to vector<16x72xf32>
    %122 = arith.mulf %121, %111 : vector<16x72xf32>
    %123 = arith.addf %105, %122 : vector<16x72xf32>
    %c33 = arith.constant 33 : index
    %c0_33 = arith.constant 0 : index
    %124 = vector.load %arg2[%c33, %c0_33] : memref<36x72xf32, #tpu.memory_space<vmem>>, vector<1x72xf32>
    %125 = vector.broadcast %124 : vector<1x72xf32> to vector<16x72xf32>
    %126 = arith.mulf %125, %111 : vector<16x72xf32>
    %127 = arith.addf %109, %126 : vector<16x72xf32>
    %128 = vector.extract_strided_slice %110 {offsets = [0, 1], sizes = [16, 72], strides = [1, 1]} : vector<16x74xf32> to vector<16x72xf32>
    %c7 = arith.constant 7 : index
    %c0_34 = arith.constant 0 : index
    %129 = vector.load %arg2[%c7, %c0_34] : memref<36x72xf32, #tpu.memory_space<vmem>>, vector<1x72xf32>
    %130 = vector.broadcast %129 : vector<1x72xf32> to vector<16x72xf32>
    %131 = arith.mulf %130, %128 : vector<16x72xf32>
    %132 = arith.addf %115, %131 : vector<16x72xf32>
    %c16 = arith.constant 16 : index
    %c0_35 = arith.constant 0 : index
    %133 = vector.load %arg2[%c16, %c0_35] : memref<36x72xf32, #tpu.memory_space<vmem>>, vector<1x72xf32>
    %134 = vector.broadcast %133 : vector<1x72xf32> to vector<16x72xf32>
    %135 = arith.mulf %134, %128 : vector<16x72xf32>
    %136 = arith.addf %119, %135 : vector<16x72xf32>
    %c25 = arith.constant 25 : index
    %c0_36 = arith.constant 0 : index
    %137 = vector.load %arg2[%c25, %c0_36] : memref<36x72xf32, #tpu.memory_space<vmem>>, vector<1x72xf32>
    %138 = vector.broadcast %137 : vector<1x72xf32> to vector<16x72xf32>
    %139 = arith.mulf %138, %128 : vector<16x72xf32>
    %140 = arith.addf %123, %139 : vector<16x72xf32>
    %c34 = arith.constant 34 : index
    %c0_37 = arith.constant 0 : index
    %141 = vector.load %arg2[%c34, %c0_37] : memref<36x72xf32, #tpu.memory_space<vmem>>, vector<1x72xf32>
    %142 = vector.broadcast %141 : vector<1x72xf32> to vector<16x72xf32>
    %143 = arith.mulf %142, %128 : vector<16x72xf32>
    %144 = arith.addf %127, %143 : vector<16x72xf32>
    %145 = vector.extract_strided_slice %110 {offsets = [0, 2], sizes = [16, 72], strides = [1, 1]} : vector<16x74xf32> to vector<16x72xf32>
    %c8 = arith.constant 8 : index
    %c0_38 = arith.constant 0 : index
    %146 = vector.load %arg2[%c8, %c0_38] : memref<36x72xf32, #tpu.memory_space<vmem>>, vector<1x72xf32>
    %147 = vector.broadcast %146 : vector<1x72xf32> to vector<16x72xf32>
    %148 = arith.mulf %147, %145 : vector<16x72xf32>
    %149 = arith.addf %132, %148 : vector<16x72xf32>
    %c17 = arith.constant 17 : index
    %c0_39 = arith.constant 0 : index
    %150 = vector.load %arg2[%c17, %c0_39] : memref<36x72xf32, #tpu.memory_space<vmem>>, vector<1x72xf32>
    %151 = vector.broadcast %150 : vector<1x72xf32> to vector<16x72xf32>
    %152 = arith.mulf %151, %145 : vector<16x72xf32>
    %153 = arith.addf %136, %152 : vector<16x72xf32>
    %c26 = arith.constant 26 : index
    %c0_40 = arith.constant 0 : index
    %154 = vector.load %arg2[%c26, %c0_40] : memref<36x72xf32, #tpu.memory_space<vmem>>, vector<1x72xf32>
    %155 = vector.broadcast %154 : vector<1x72xf32> to vector<16x72xf32>
    %156 = arith.mulf %155, %145 : vector<16x72xf32>
    %157 = arith.addf %140, %156 : vector<16x72xf32>
    %c35 = arith.constant 35 : index
    %c0_41 = arith.constant 0 : index
    %158 = vector.load %arg2[%c35, %c0_41] : memref<36x72xf32, #tpu.memory_space<vmem>>, vector<1x72xf32>
    %159 = vector.broadcast %158 : vector<1x72xf32> to vector<16x72xf32>
    %160 = arith.mulf %159, %145 : vector<16x72xf32>
    %161 = arith.addf %144, %160 : vector<16x72xf32>
    %162 = vector.extract_strided_slice %149 {offsets = [0, 0], sizes = [16, 18], strides = [1, 1]} : vector<16x72xf32> to vector<16x18xf32>
    %163 = vector.extract_strided_slice %149 {offsets = [0, 18], sizes = [16, 18], strides = [1, 1]} : vector<16x72xf32> to vector<16x18xf32>
    %164 = arith.addf %162, %163 : vector<16x18xf32>
    %165 = vector.extract_strided_slice %149 {offsets = [0, 36], sizes = [16, 18], strides = [1, 1]} : vector<16x72xf32> to vector<16x18xf32>
    %166 = arith.addf %164, %165 : vector<16x18xf32>
    %167 = vector.extract_strided_slice %149 {offsets = [0, 54], sizes = [16, 18], strides = [1, 1]} : vector<16x72xf32> to vector<16x18xf32>
    %168 = arith.addf %166, %167 : vector<16x18xf32>
    %169 = math.absf %168 : vector<16x18xf32>
    %170 = vector.extract_strided_slice %153 {offsets = [0, 0], sizes = [16, 18], strides = [1, 1]} : vector<16x72xf32> to vector<16x18xf32>
    %171 = vector.extract_strided_slice %153 {offsets = [0, 18], sizes = [16, 18], strides = [1, 1]} : vector<16x72xf32> to vector<16x18xf32>
    %172 = arith.addf %170, %171 : vector<16x18xf32>
    %173 = vector.extract_strided_slice %153 {offsets = [0, 36], sizes = [16, 18], strides = [1, 1]} : vector<16x72xf32> to vector<16x18xf32>
    %174 = arith.addf %172, %173 : vector<16x18xf32>
    %175 = vector.extract_strided_slice %153 {offsets = [0, 54], sizes = [16, 18], strides = [1, 1]} : vector<16x72xf32> to vector<16x18xf32>
    %176 = arith.addf %174, %175 : vector<16x18xf32>
    %177 = math.absf %176 : vector<16x18xf32>
    %178 = arith.addf %169, %177 : vector<16x18xf32>
    %179 = vector.extract_strided_slice %157 {offsets = [0, 0], sizes = [16, 18], strides = [1, 1]} : vector<16x72xf32> to vector<16x18xf32>
    %180 = vector.extract_strided_slice %157 {offsets = [0, 18], sizes = [16, 18], strides = [1, 1]} : vector<16x72xf32> to vector<16x18xf32>
    %181 = arith.addf %179, %180 : vector<16x18xf32>
    %182 = vector.extract_strided_slice %157 {offsets = [0, 36], sizes = [16, 18], strides = [1, 1]} : vector<16x72xf32> to vector<16x18xf32>
    %183 = arith.addf %181, %182 : vector<16x18xf32>
    %184 = vector.extract_strided_slice %157 {offsets = [0, 54], sizes = [16, 18], strides = [1, 1]} : vector<16x72xf32> to vector<16x18xf32>
    %185 = arith.addf %183, %184 : vector<16x18xf32>
    %186 = math.absf %185 : vector<16x18xf32>
    %187 = arith.addf %178, %186 : vector<16x18xf32>
    %188 = vector.extract_strided_slice %161 {offsets = [0, 0], sizes = [16, 18], strides = [1, 1]} : vector<16x72xf32> to vector<16x18xf32>
    %189 = vector.extract_strided_slice %161 {offsets = [0, 18], sizes = [16, 18], strides = [1, 1]} : vector<16x72xf32> to vector<16x18xf32>
    %190 = arith.addf %188, %189 : vector<16x18xf32>
    %191 = vector.extract_strided_slice %161 {offsets = [0, 36], sizes = [16, 18], strides = [1, 1]} : vector<16x72xf32> to vector<16x18xf32>
    %192 = arith.addf %190, %191 : vector<16x18xf32>
    %193 = vector.extract_strided_slice %161 {offsets = [0, 54], sizes = [16, 18], strides = [1, 1]} : vector<16x72xf32> to vector<16x18xf32>
    %194 = arith.addf %192, %193 : vector<16x18xf32>
    %195 = math.absf %194 : vector<16x18xf32>
    %196 = arith.addf %187, %195 : vector<16x18xf32>
    %197 = vector.extract_strided_slice %196 {offsets = [0, 0], sizes = [16, 16], strides = [1, 1]} : vector<16x18xf32> to vector<16x16xf32>
    %cst_42 = arith.constant 0.000000e+00 : f32
    %cst_43 = arith.constant 2.550000e+02 : f32
    %198 = vector.broadcast %cst_42 : f32 to vector<16x16xf32>
    %199 = arith.maximumf %198, %197 : vector<16x16xf32>
    %200 = vector.broadcast %cst_43 : f32 to vector<16x16xf32>
    %201 = arith.minimumf %200, %199 : vector<16x16xf32>
    %c0_44 = arith.constant 0 : index
    %c0_45 = arith.constant 0 : index
    %c0_46 = arith.constant 0 : index
    %202 = vector.load %arg3[%c0_44, %c0_45, %c0_46] : memref<1x16x16xf32, #tpu.memory_space<vmem>>, vector<1x16x16xf32>
    %203 = vector.shape_cast %202 : vector<1x16x16xf32> to vector<16x16xf32>
    %204 = vector.shape_cast %201 : vector<16x16xf32> to vector<1x16x16xf32>
    tpu.vector_store %arg3[%c0_44, %c0_45, %c0_46], %204 {strides = array<i32>} : memref<1x16x16xf32, #tpu.memory_space<vmem>>, vector<1x16x16xf32>,
    return
  }
  func.func @transform_0(%arg0: i32) -> (i32, i32, i32) {
    %c0_i32 = arith.constant 0 : i32
    %c0_i32_0 = arith.constant 0 : i32
    %c0_i32_1 = arith.constant 0 : i32
    return %arg0, %c0_i32, %c0_i32_0 : i32, i32, i32
  }
  func.func @transform_1(%arg0: i32) -> (i32, i32) {
    %c0_i32 = arith.constant 0 : i32
    %c0_i32_0 = arith.constant 0 : i32
    %c0_i32_1 = arith.constant 0 : i32
    return %c0_i32, %c0_i32_0 : i32, i32
  }
  func.func @transform_2(%arg0: i32) -> (i32, i32, i32) {
    %c0_i32 = arith.constant 0 : i32
    %c0_i32_0 = arith.constant 0 : i32
    %c0_i32_1 = arith.constant 0 : i32
    return %arg0, %c0_i32, %c0_i32_0 : i32, i32, i32
  }
}

</mosaic_0001>

<llo_original>
// kernel: tpu_custom_call.1
$region0: #{tpu_custom_call.1}
  #allocation0 [shape = 'u32[]', space=smem, size = 0x4, offset = 0x4, fixed_abs, tag = 'smem constant byte address 0x4 - core index']
  #allocation1 [shape = 'u32[144,128]{1,0:T(1,128)}', space=vmem, size = 0x12000, scoped, tag = 'internal scratch']
  %s0 = inlined_call_operand.vmem [shape: f32[2,18,74], index: 0, kind: input, shape index: {}]
  %s1 = inlined_call_operand.vmem [shape: f32[36,72], index: 1, kind: input, shape index: {}]
  %s2 = inlined_call_operand.hbm [shape: f32[2,16,16], index: 2, kind: output, shape index: {}]
  %s3 = sld [smem:[#allocation0]]
  $region41: #{tpu_custom_call.1} parent=0
    _
  %s5 = ssub.s32 1, %s3
  %s6 = scalar_select 0, %s5, %s3
  $region1: #{tpu_custom_call.1} parent=0
    #allocation2 [shape = 'u8[16384]{0}', space=vmem, size = 0x4000, scoped, tag = 'output window, operand 0']
    #allocation3 [shape = 's32[2]{0}', space=sflag, size = 0x8, scoped, tag = 'scoped memory for tpu_custom_call.1']
    %7 = vsyncpa [#allocation3], 0
    %s8 = scalar_lea.sflag [#allocation3], 1
    %9 = vsyncpa %s8, 0
    loop: start=0, step=1, limit=4
    $region2: #{tpu_custom_call.1} parent=1 // loop_pre_header
      _
    $region3: #{tpu_custom_call.1} parent=1 // loop_header
      %s11 = sphi 0, %s15
      %p12 = scmp.ge.s32.totalorder %s11, 4
      %s21 = sphi 0, %s23
      %s24 = sphi 0, %s21
      %s25 = sphi 0, %s24
      %s41 = sphi 0, %s25
      %s45 = sphi 0, %s45
      %s47 = sphi 0, %s45
      %s48 = sphi 0, %s47
      %s62 = sphi 0, %s48
      %s68 = sphi 0, %s70
      %s71 = sphi 0, %s68
      %s72 = sphi 0, %s71
      %s88 = sphi 0, %s72
    $region4: #{tpu_custom_call.1} parent=1 // loop_header_branch
      %14 = sbr.rel (%p12) target = $region8
    $region5: #{tpu_custom_call.1} parent=1 // loop_body
      %s16 = ssub.s32 %s11, 1
      %s17 = ssub.s32 %s11, 2
      %s18 = sadd.s32 %s11, 1
      %s19 = ssub.s32 %s11, %s18
      %p20 = scmp.eq.s32.totalorder %s19, 0
      %s22 = sadd.s32 %s21, 1
      %s23 = scalar_select %p20, %s21, %s22
      %p26 = pneg %p20
      %p27 = scmp.eq.s32.totalorder %s11, 1
      %p28 = por %p26, %p27
      %p29 = scmp.ne.s32.totalorder %s21, %s24
      %p30 = scmp.eq.s32.totalorder %s11, 0
      %p31 = por %p29, %p30
      %p32 = scmp.ne.s32.totalorder %s21, %s24
      %p33 = scmp.eq.s32.totalorder %s16, 1
      %p34 = por %p32, %p33
      %p35 = scmp.ne.s32.totalorder %s24, %s25
      %p36 = scmp.eq.s32.totalorder %s16, 0
      %p37 = por %p35, %p36
      %p38 = scmp.ne.s32.totalorder %s24, %s25
      %p39 = scmp.eq.s32.totalorder %s17, 1
      %p40 = por %p38, %p39
      %p42 = scmp.ne.s32.totalorder %s25, %s41
      %p43 = scmp.eq.s32.totalorder %s17, 0
      %p44 = por %p42, %p43
      %s46 = sadd.s32 %s45, 1
      %p49 = scmp.eq.s32.totalorder %s11, 1
      %p50 = scmp.ne.s32.totalorder %s45, %s47
      %p51 = scmp.eq.s32.totalorder %s11, 0
      %p52 = por %p50, %p51
      %p53 = scmp.ne.s32.totalorder %s45, %s47
      %p54 = scmp.eq.s32.totalorder %s16, 1
      %p55 = por %p53, %p54
      %p56 = scmp.ne.s32.totalorder %s47, %s48
      %p57 = scmp.eq.s32.totalorder %s16, 0
      %p58 = por %p56, %p57
      %p59 = scmp.ne.s32.totalorder %s47, %s48
      %p60 = scmp.eq.s32.totalorder %s17, 1
      %p61 = por %p59, %p60
      %p63 = scmp.ne.s32.totalorder %s48, %s62
      %p64 = scmp.eq.s32.totalorder %s17, 0
      %p65 = por %p63, %p64
      %s66 = ssub.s32 %s11, %s18
      %p67 = scmp.eq.s32.totalorder %s66, 0
      %s69 = sadd.s32 %s68, 1
      %s70 = scalar_select %p67, %s68, %s69
      %p73 = pneg %p67
      %p74 = scmp.eq.s32.totalorder %s11, 1
      %p75 = por %p73, %p74
      %p76 = scmp.ne.s32.totalorder %s68, %s71
      %p77 = scmp.eq.s32.totalorder %s11, 0
      %p78 = por %p76, %p77
      %p79 = scmp.ne.s32.totalorder %s68, %s71
      %p80 = scmp.eq.s32.totalorder %s16, 1
      %p81 = por %p79, %p80
      %p82 = scmp.ne.s32.totalorder %s71, %s72
      %p83 = scmp.eq.s32.totalorder %s16, 0
      %p84 = por %p82, %p83
      %p85 = scmp.ne.s32.totalorder %s71, %s72
      %p86 = scmp.eq.s32.totalorder %s17, 1
      %p87 = por %p85, %p86
      %p89 = scmp.ne.s32.totalorder %s72, %s88
      %p90 = scmp.eq.s32.totalorder %s17, 0
      %p91 = por %p89, %p90
      %p92 = scmp.le.s32.totalorder 1, %s11
      %p93 = scmp.lt.s32.totalorder %s11, 3
      %p94 = pnand %p92, %p93
      %p95 = pneg %p94
      // Predicated region
      $region9: #{tpu_custom_call.1} parent=5 // pred_check
        _
      $region10: #{tpu_custom_call.1} parent=5 // pred_check_branch
        %97 = sbr.rel (%p94) target = $region12
      $region11: #{tpu_custom_call.1} parent=5 // pred_region
        %s98 = ssub.s32 %s11, 1
        // Predicated region
        $region13: #{tpu_custom_call.1} parent=11 // pred_check
          %p99 = pneg %p58
        $region14: #{tpu_custom_call.1} parent=11 // pred_check_branch
          %101 = sbr.rel (%p99) target = $region16
        $region15: #{tpu_custom_call.1} parent=11 // pred_region
          _
        $region16: #{tpu_custom_call.1} parent=11 // pred_fallthru
          _
      $region12: #{tpu_custom_call.1} parent=5 // pred_fallthru
        _
      %p102 = scmp.lt.s32.totalorder %s11, 2
      // Predicated region
      $region17: #{tpu_custom_call.1} parent=5 // pred_check
        %p103 = pneg %p102
      $region18: #{tpu_custom_call.1} parent=5 // pred_check_branch
        %105 = sbr.rel (%p103) target = $region20
      $region19: #{tpu_custom_call.1} parent=5 // pred_region
        // Predicated region
        $region21: #{tpu_custom_call.1} parent=19 // pred_check
          %p106 = pneg %p31
        $region22: #{tpu_custom_call.1} parent=19 // pred_check_branch
          %108 = sbr.rel (%p106) target = $region24
        $region23: #{tpu_custom_call.1} parent=19 // pred_region
          %p109 = scmp.lt.s32.totalorder %s11, 1
          %s110 = scalar_select %p109, %s11, 1
          %s111 = smul.addr %s110, 3
          %s112 = smul.addr %s111, 8
          %s113 = scalar_lea.vmem %s0, %s112
        $region24: #{tpu_custom_call.1} parent=19 // pred_fallthru
          _
      $region20: #{tpu_custom_call.1} parent=5 // pred_fallthru
        _
      %p114 = scmp.le.s32.totalorder 1, %s11
      %p115 = scmp.lt.s32.totalorder %s11, 3
      %p116 = pnand %p114, %p115
      %p117 = pneg %p116
      // Predicated region
      $region25: #{tpu_custom_call.1} parent=5 // pred_check
        _
      $region26: #{tpu_custom_call.1} parent=5 // pred_check_branch
        %119 = sbr.rel (%p116) target = $region28
      $region27: #{tpu_custom_call.1} parent=5 // pred_region
        %s120 = ssub.s32 %s11, 1
        %p121 = scmp.lt.s32.totalorder %s16, 1
        %s122 = scalar_select %p121, %s16, 1
        %s123 = smul.addr %s122, 3
        %s124 = smul.addr %s123, 8
        %s125 = scalar_lea.vmem %s0, %s124
        %p126 = pneg %p37
        %p127 = pneg %p34
        %p128 = pneg %p58
        %p129 = pneg %p55
        %p130 = pneg %p84
        %p131 = pneg %p81
        %s132 = sand.u32 %s71, 1
        %s133 = scalar_lea.sflag [#allocation3], %s132
        %s134 = sand.u32 %s71, 1
        %s135 = smul.addr %s134, 16
        %s136 = scalar_lea.vmem [#allocation2], %s135
        %p137 = scmp.lt.s32.totalorder %s16, 1
        %s138 = scalar_select %p137, %s16, 1
        %s139 = smul.addr %s138, 3
        %s140 = smul.addr %s139, 8
        %s141 = scalar_lea.vmem %s0, %s140
        %v142 = vld [vmem:[%s141] sm:$0xff]
        %v143 = vld [vmem:[%s141 + $0x8] sm:$0xff]
        %v144 = vld [vmem:[%s141 + $0x10] sm:$0x3]
        %v145 = vld [vmem:[%s1] sm:$0x1]
        %v146 = vlaneseq
        %v147 = vshrl.u32 %v146, 7
        %v148 = vsub.s32 0, %v147
        %v149 = vrot.slane %v145, %v148
        %v150 = vmul.f32 %v149, %v142
        %v151 = vmul.f32 %v149, %v143
        %v152 = vadd.f32 %v150, 0.0
        %v153 = vadd.f32 %v151, 0.0
        %v154 = vld [vmem:[%s1 + $0x9] sm:$0x1]
        %v155 = vlaneseq
        %v156 = vshrl.u32 %v155, 7
        %v157 = vsub.s32 0, %v156
        %v158 = vrot.slane %v154, %v157
        %v159 = vmul.f32 %v158, %v142
        %v160 = vmul.f32 %v158, %v143
        %v161 = vadd.f32 %v159, 0.0
        %v162 = vadd.f32 %v160, 0.0
        %v163 = vld [vmem:[%s1 + $0x12] sm:$0x1]
        %v164 = vlaneseq
        %v165 = vshrl.u32 %v164, 7
        %v166 = vsub.s32 0, %v165
        %v167 = vrot.slane %v163, %v166
        %v168 = vmul.f32 %v167, %v142
        %v169 = vmul.f32 %v167, %v143
        %v170 = vadd.f32 %v168, 0.0
        %v171 = vadd.f32 %v169, 0.0
        %v172 = vld [vmem:[%s1 + $0x1b] sm:$0x1]
        %v173 = vlaneseq
        %v174 = vshrl.u32 %v173, 7
        %v175 = vsub.s32 0, %v174
        %v176 = vrot.slane %v172, %v175
        %v177 = vmul.f32 %v176, %v142
        %v178 = vmul.f32 %v176, %v143
        %v179 = vadd.f32 %v177, 0.0
        %v180 = vadd.f32 %v178, 0.0
        %v181 = vld [vmem:[%s1 + $0x1] sm:$0x1]
        %v182 = vlaneseq
        %v183 = vshrl.u32 %v182, 7
        %v184 = vsub.s32 0, %v183
        %v185 = vrot.slane %v181, %v184
        %188 = vrot.lane.b32.xlu0 %v142, 127
        %v189 = vpop.permute.xlu0 %188
        %190 = vrot.lane.b32.xlu0 %v143, 127
        %v191 = vpop.permute.xlu0 %190
        %v194 = vmul.f32 %v185, %v189
        %v195 = vmul.f32 %v185, %v191
        %v196 = vadd.f32 %v152, %v194
        %v197 = vadd.f32 %v153, %v195
        %v198 = vld [vmem:[%s1 + $0xa] sm:$0x1]
        %v199 = vlaneseq
        %v200 = vshrl.u32 %v199, 7
        %v201 = vsub.s32 0, %v200
        %v202 = vrot.slane %v198, %v201
        %v203 = vmul.f32 %v202, %v189
        %v204 = vmul.f32 %v202, %v191
        %v205 = vadd.f32 %v161, %v203
        %v206 = vadd.f32 %v162, %v204
        %v207 = vld [vmem:[%s1 + $0x13] sm:$0x1]
        %v208 = vlaneseq
        %v209 = vshrl.u32 %v208, 7
        %v210 = vsub.s32 0, %v209
        %v211 = vrot.slane %v207, %v210
        %v212 = vmul.f32 %v211, %v189
        %v213 = vmul.f32 %v211, %v191
        %v214 = vadd.f32 %v170, %v212
        %v215 = vadd.f32 %v171, %v213
        %v216 = vld [vmem:[%s1 + $0x1c] sm:$0x1]
        %v217 = vlaneseq
        %v218 = vshrl.u32 %v217, 7
        %v219 = vsub.s32 0, %v218
        %v220 = vrot.slane %v216, %v219
        %v221 = vmul.f32 %v220, %v189
        %v222 = vmul.f32 %v220, %v191
        %v223 = vadd.f32 %v179, %v221
        %v224 = vadd.f32 %v180, %v222
        %v225 = vld [vmem:[%s1 + $0x2] sm:$0x1]
        %v226 = vlaneseq
        %v227 = vshrl.u32 %v226, 7
        %v228 = vsub.s32 0, %v227
        %v229 = vrot.slane %v225, %v228
        %230 = vrot.lane.b32.xlu0 %v142, 126
        %v231 = vpop.permute.xlu0 %230
        %232 = vrot.lane.b32.xlu0 %v143, 126
        %v233 = vpop.permute.xlu0 %232
        %v236 = vmul.f32 %v229, %v231
        %v237 = vmul.f32 %v229, %v233
        %v238 = vadd.f32 %v196, %v236
        %v239 = vadd.f32 %v197, %v237
        %v240 = vld [vmem:[%s1 + $0xb] sm:$0x1]
        %v241 = vlaneseq
        %v242 = vshrl.u32 %v241, 7
        %v243 = vsub.s32 0, %v242
        %v244 = vrot.slane %v240, %v243
        %v245 = vmul.f32 %v244, %v231
        %v246 = vmul.f32 %v244, %v233
        %v247 = vadd.f32 %v205, %v245
        %v248 = vadd.f32 %v206, %v246
        %v249 = vld [vmem:[%s1 + $0x14] sm:$0x1]
        %v250 = vlaneseq
        %v251 = vshrl.u32 %v250, 7
        %v252 = vsub.s32 0, %v251
        %v253 = vrot.slane %v249, %v252
        %v254 = vmul.f32 %v253, %v231
        %v255 = vmul.f32 %v253, %v233
        %v256 = vadd.f32 %v214, %v254
        %v257 = vadd.f32 %v215, %v255
        %v258 = vld [vmem:[%s1 + $0x1d] sm:$0x1]
        %v259 = vlaneseq
        %v260 = vshrl.u32 %v259, 7
        %v261 = vsub.s32 0, %v260
        %v262 = vrot.slane %v258, %v261
        %v263 = vmul.f32 %v262, %v231
        %v264 = vmul.f32 %v262, %v233
        %v265 = vadd.f32 %v223, %v263
        %v266 = vadd.f32 %v224, %v264
        %v267 = vld [vmem:[%s1 + $0x3] sm:$0x1]
        %v268 = vlaneseq
        %v269 = vshrl.u32 %v268, 7
        %v270 = vsub.s32 0, %v269
        %v271 = vrot.slane %v267, %v270
        %v272 = vmul.f32 %v271, %v142
        %v273 = vmul.f32 %v271, %v143
        %v274 = vmul.f32 %v271, %v144
        %vm278 = vcmask 1046528
        %v279 = vrot.slane %v272, 1
        %v280 = vrot.slane %v273, 1
        %v281 = vsel %vm278, %v279, %v280
        %v282 = vrot.slane %v274, 1
        %v283 = vsel %vm278, %v280, %v282
        %v286 = vadd.f32 %v238, %v281
        %v287 = vadd.f32 %v239, %v283
        %v288 = vld [vmem:[%s1 + $0xc] sm:$0x1]
        %v289 = vlaneseq
        %v290 = vshrl.u32 %v289, 7
        %v291 = vsub.s32 0, %v290
        %v292 = vrot.slane %v288, %v291
        %v293 = vmul.f32 %v292, %v142
        %v294 = vmul.f32 %v292, %v143
        %v295 = vmul.f32 %v292, %v144
        %v299 = vrot.slane %v293, 1
        %v300 = vrot.slane %v294, 1
        %v301 = vsel %vm278, %v299, %v300
        %v302 = vrot.slane %v295, 1
        %v303 = vsel %vm278, %v300, %v302
        %v306 = vadd.f32 %v247, %v301
        %v307 = vadd.f32 %v248, %v303
        %v308 = vld [vmem:[%s1 + $0x15] sm:$0x1]
        %v309 = vlaneseq
        %v310 = vshrl.u32 %v309, 7
        %v311 = vsub.s32 0, %v310
        %v312 = vrot.slane %v308, %v311
        %v313 = vmul.f32 %v312, %v142
        %v314 = vmul.f32 %v312, %v143
        %v315 = vmul.f32 %v312, %v144
        %v319 = vrot.slane %v313, 1
        %v320 = vrot.slane %v314, 1
        %v321 = vsel %vm278, %v319, %v320
        %v322 = vrot.slane %v315, 1
        %v323 = vsel %vm278, %v320, %v322
        %v326 = vadd.f32 %v256, %v321
        %v327 = vadd.f32 %v257, %v323
        %v328 = vld [vmem:[%s1 + $0x1e] sm:$0x1]
        %v329 = vlaneseq
        %v330 = vshrl.u32 %v329, 7
        %v331 = vsub.s32 0, %v330
        %v332 = vrot.slane %v328, %v331
        %v333 = vmul.f32 %v332, %v142
        %v334 = vmul.f32 %v332, %v143
        %v335 = vmul.f32 %v332, %v144
        %v339 = vrot.slane %v333, 1
        %v340 = vrot.slane %v334, 1
        %v341 = vsel %vm278, %v339, %v340
        %v342 = vrot.slane %v335, 1
        %v343 = vsel %vm278, %v340, %v342
        %v346 = vadd.f32 %v265, %v341
        %v347 = vadd.f32 %v266, %v343
        %v348 = vld [vmem:[%s1 + $0x4] sm:$0x1]
        %v349 = vlaneseq
        %v350 = vshrl.u32 %v349, 7
        %v351 = vsub.s32 0, %v350
        %v352 = vrot.slane %v348, %v351
        %v354 = vrot.slane %v142, 1
        %v355 = vrot.slane %v143, 1
        %v356 = vsel %vm278, %v354, %v355
        %v357 = vrot.slane %v144, 1
        %v358 = vsel %vm278, %v355, %v357
        %359 = vrot.lane.b32.xlu0 %v356, 127
        %v360 = vpop.permute.xlu0 %359
        %361 = vrot.lane.b32.xlu0 %v358, 127
        %v362 = vpop.permute.xlu0 %361
        %v365 = vmul.f32 %v352, %v360
        %v366 = vmul.f32 %v352, %v362
        %v367 = vadd.f32 %v286, %v365
        %v368 = vadd.f32 %v287, %v366
        %v369 = vld [vmem:[%s1 + $0xd] sm:$0x1]
        %v370 = vlaneseq
        %v371 = vshrl.u32 %v370, 7
        %v372 = vsub.s32 0, %v371
        %v373 = vrot.slane %v369, %v372
        %v374 = vmul.f32 %v373, %v360
        %v375 = vmul.f32 %v373, %v362
        %v376 = vadd.f32 %v306, %v374
        %v377 = vadd.f32 %v307, %v375
        %v378 = vld [vmem:[%s1 + $0x16] sm:$0x1]
        %v379 = vlaneseq
        %v380 = vshrl.u32 %v379, 7
        %v381 = vsub.s32 0, %v380
        %v382 = vrot.slane %v378, %v381
        %v383 = vmul.f32 %v382, %v360
        %v384 = vmul.f32 %v382, %v362
        %v385 = vadd.f32 %v326, %v383
        %v386 = vadd.f32 %v327, %v384
        %v387 = vld [vmem:[%s1 + $0x1f] sm:$0x1]
        %v388 = vlaneseq
        %v389 = vshrl.u32 %v388, 7
        %v390 = vsub.s32 0, %v389
        %v391 = vrot.slane %v387, %v390
        %v392 = vmul.f32 %v391, %v360
        %v393 = vmul.f32 %v391, %v362
        %v394 = vadd.f32 %v346, %v392
        %v395 = vadd.f32 %v347, %v393
        %v396 = vld [vmem:[%s1 + $0x5] sm:$0x1]
        %v397 = vlaneseq
        %v398 = vshrl.u32 %v397, 7
        %v399 = vsub.s32 0, %v398
        %v400 = vrot.slane %v396, %v399
        %401 = vrot.lane.b32.xlu0 %v356, 126
        %v402 = vpop.permute.xlu0 %401
        %403 = vrot.lane.b32.xlu0 %v358, 126
        %v404 = vpop.permute.xlu0 %403
        %v407 = vmul.f32 %v400, %v402
        %v408 = vmul.f32 %v400, %v404
        %v409 = vadd.f32 %v367, %v407
        %v410 = vadd.f32 %v368, %v408
        %v411 = vld [vmem:[%s1 + $0xe] sm:$0x1]
        %v412 = vlaneseq
        %v413 = vshrl.u32 %v412, 7
        %v414 = vsub.s32 0, %v413
        %v415 = vrot.slane %v411, %v414
        %v416 = vmul.f32 %v415, %v402
        %v417 = vmul.f32 %v415, %v404
        %v418 = vadd.f32 %v376, %v416
        %v419 = vadd.f32 %v377, %v417
        %v420 = vld [vmem:[%s1 + $0x17] sm:$0x1]
        %v421 = vlaneseq
        %v422 = vshrl.u32 %v421, 7
        %v423 = vsub.s32 0, %v422
        %v424 = vrot.slane %v420, %v423
        %v425 = vmul.f32 %v424, %v402
        %v426 = vmul.f32 %v424, %v404
        %v427 = vadd.f32 %v385, %v425
        %v428 = vadd.f32 %v386, %v426
        %v429 = vld [vmem:[%s1 + $0x20] sm:$0x1]
        %v430 = vlaneseq
        %v431 = vshrl.u32 %v430, 7
        %v432 = vsub.s32 0, %v431
        %v433 = vrot.slane %v429, %v432
        %v434 = vmul.f32 %v433, %v402
        %v435 = vmul.f32 %v433, %v404
        %v436 = vadd.f32 %v394, %v434
        %v437 = vadd.f32 %v395, %v435
        %v438 = vld [vmem:[%s1 + $0x6] sm:$0x1]
        %v439 = vlaneseq
        %v440 = vshrl.u32 %v439, 7
        %v441 = vsub.s32 0, %v440
        %v442 = vrot.slane %v438, %v441
        %v443 = vmul.f32 %v442, %v142
        %v444 = vmul.f32 %v442, %v143
        %v445 = vmul.f32 %v442, %v144
        %vm449 = vcmask 1045504
        %v450 = vrot.slane %v443, 2
        %v451 = vrot.slane %v444, 2
        %v452 = vsel %vm449, %v450, %v451
        %v453 = vrot.slane %v445, 2
        %v454 = vsel %vm449, %v451, %v453
        %v457 = vadd.f32 %v409, %v452
        %v458 = vadd.f32 %v410, %v454
        %v459 = vld [vmem:[%s1 + $0xf] sm:$0x1]
        %v460 = vlaneseq
        %v461 = vshrl.u32 %v460, 7
        %v462 = vsub.s32 0, %v461
        %v463 = vrot.slane %v459, %v462
        %v464 = vmul.f32 %v463, %v142
        %v465 = vmul.f32 %v463, %v143
        %v466 = vmul.f32 %v463, %v144
        %v470 = vrot.slane %v464, 2
        %v471 = vrot.slane %v465, 2
        %v472 = vsel %vm449, %v470, %v471
        %v473 = vrot.slane %v466, 2
        %v474 = vsel %vm449, %v471, %v473
        %v477 = vadd.f32 %v418, %v472
        %v478 = vadd.f32 %v419, %v474
        %v479 = vld [vmem:[%s1 + $0x18] sm:$0x1]
        %v480 = vlaneseq
        %v481 = vshrl.u32 %v480, 7
        %v482 = vsub.s32 0, %v481
        %v483 = vrot.slane %v479, %v482
        %v484 = vmul.f32 %v483, %v142
        %v485 = vmul.f32 %v483, %v143
        %v486 = vmul.f32 %v483, %v144
        %v490 = vrot.slane %v484, 2
        %v491 = vrot.slane %v485, 2
        %v492 = vsel %vm449, %v490, %v491
        %v493 = vrot.slane %v486, 2
        %v494 = vsel %vm449, %v491, %v493
        %v497 = vadd.f32 %v427, %v492
        %v498 = vadd.f32 %v428, %v494
        %v499 = vld [vmem:[%s1 + $0x21] sm:$0x1]
        %v500 = vlaneseq
        %v501 = vshrl.u32 %v500, 7
        %v502 = vsub.s32 0, %v501
        %v503 = vrot.slane %v499, %v502
        %v504 = vmul.f32 %v503, %v142
        %v505 = vmul.f32 %v503, %v143
        %v506 = vmul.f32 %v503, %v144
        %v510 = vrot.slane %v504, 2
        %v511 = vrot.slane %v505, 2
        %v512 = vsel %vm449, %v510, %v511
        %v513 = vrot.slane %v506, 2
        %v514 = vsel %vm449, %v511, %v513
        %v517 = vadd.f32 %v436, %v512
        %v518 = vadd.f32 %v437, %v514
        %v519 = vld [vmem:[%s1 + $0x7] sm:$0x1]
        %v520 = vlaneseq
        %v521 = vshrl.u32 %v520, 7
        %v522 = vsub.s32 0, %v521
        %v523 = vrot.slane %v519, %v522
        %v524 = vrot.slane %v142, 2
        %v525 = vrot.slane %v143, 2
        %v526 = vsel %vm449, %v524, %v525
        %v527 = vrot.slane %v144, 2
        %v528 = vsel %vm449, %v525, %v527
        %529 = vrot.lane.b32.xlu0 %v526, 127
        %v530 = vpop.permute.xlu0 %529
        %531 = vrot.lane.b32.xlu0 %v528, 127
        %v532 = vpop.permute.xlu0 %531
        %v535 = vmul.f32 %v523, %v530
        %v536 = vmul.f32 %v523, %v532
        %v537 = vadd.f32 %v457, %v535
        %v538 = vadd.f32 %v458, %v536
        %v539 = vld [vmem:[%s1 + $0x10] sm:$0x1]
        %v540 = vlaneseq
        %v541 = vshrl.u32 %v540, 7
        %v542 = vsub.s32 0, %v541
        %v543 = vrot.slane %v539, %v542
        %v544 = vmul.f32 %v543, %v530
        %v545 = vmul.f32 %v543, %v532
        %v546 = vadd.f32 %v477, %v544
        %v547 = vadd.f32 %v478, %v545
        %v548 = vld [vmem:[%s1 + $0x19] sm:$0x1]
        %v549 = vlaneseq
        %v550 = vshrl.u32 %v549, 7
        %v551 = vsub.s32 0, %v550
        %v552 = vrot.slane %v548, %v551
        %v553 = vmul.f32 %v552, %v530
        %v554 = vmul.f32 %v552, %v532
        %v555 = vadd.f32 %v497, %v553
        %v556 = vadd.f32 %v498, %v554
        %v557 = vld [vmem:[%s1 + $0x22] sm:$0x1]
        %v558 = vlaneseq
        %v559 = vshrl.u32 %v558, 7
        %v560 = vsub.s32 0, %v559
        %v561 = vrot.slane %v557, %v560
        %v562 = vmul.f32 %v561, %v530
        %v563 = vmul.f32 %v561, %v532
        %v564 = vadd.f32 %v517, %v562
        %v565 = vadd.f32 %v518, %v563
        %v566 = vld [vmem:[%s1 + $0x8] sm:$0x1]
        %v567 = vlaneseq
        %v568 = vshrl.u32 %v567, 7
        %v569 = vsub.s32 0, %v568
        %v570 = vrot.slane %v566, %v569
        %571 = vrot.lane.b32.xlu0 %v526, 126
        %v572 = vpop.permute.xlu0 %571
        %573 = vrot.lane.b32.xlu0 %v528, 126
        %v574 = vpop.permute.xlu0 %573
        %v577 = vmul.f32 %v570, %v572
        %v578 = vmul.f32 %v570, %v574
        %v579 = vadd.f32 %v537, %v577
        %v580 = vadd.f32 %v538, %v578
        %v581 = vld [vmem:[%s1 + $0x11] sm:$0x1]
        %v582 = vlaneseq
        %v583 = vshrl.u32 %v582, 7
        %v584 = vsub.s32 0, %v583
        %v585 = vrot.slane %v581, %v584
        %v586 = vmul.f32 %v585, %v572
        %v587 = vmul.f32 %v585, %v574
        %v588 = vadd.f32 %v546, %v586
        %v589 = vadd.f32 %v547, %v587
        %v590 = vld [vmem:[%s1 + $0x1a] sm:$0x1]
        %v591 = vlaneseq
        %v592 = vshrl.u32 %v591, 7
        %v593 = vsub.s32 0, %v592
        %v594 = vrot.slane %v590, %v593
        %v595 = vmul.f32 %v594, %v572
        %v596 = vmul.f32 %v594, %v574
        %v597 = vadd.f32 %v555, %v595
        %v598 = vadd.f32 %v556, %v596
        %v599 = vld [vmem:[%s1 + $0x23] sm:$0x1]
        %v600 = vlaneseq
        %v601 = vshrl.u32 %v600, 7
        %v602 = vsub.s32 0, %v601
        %v603 = vrot.slane %v599, %v602
        %v604 = vmul.f32 %v603, %v572
        %v605 = vmul.f32 %v603, %v574
        %v606 = vadd.f32 %v564, %v604
        %v607 = vadd.f32 %v565, %v605
        %610 = vrot.lane.b32.xlu0 %v579, 110
        %v611 = vpop.permute.xlu0 %610
        %612 = vrot.lane.b32.xlu0 %v580, 110
        %v613 = vpop.permute.xlu0 %612
        %v616 = vadd.f32 %v579, %v611
        %v617 = vadd.f32 %v580, %v613
        %618 = vrot.lane.b32.xlu0 %v579, 92
        %v619 = vpop.permute.xlu0 %618
        %620 = vrot.lane.b32.xlu0 %v580, 92
        %v621 = vpop.permute.xlu0 %620
        %v624 = vadd.f32 %v616, %v619
        %v625 = vadd.f32 %v617, %v621
        %626 = vrot.lane.b32.xlu0 %v579, 74
        %v627 = vpop.permute.xlu0 %626
        %628 = vrot.lane.b32.xlu0 %v580, 74
        %v629 = vpop.permute.xlu0 %628
        %v632 = vadd.f32 %v624, %v627
        %v633 = vadd.f32 %v625, %v629
        %v634 = vand.u32 2147483647, %v632
        %v635 = vand.u32 2147483647, %v633
        %638 = vrot.lane.b32.xlu0 %v588, 110
        %v639 = vpop.permute.xlu0 %638
        %640 = vrot.lane.b32.xlu0 %v589, 110
        %v641 = vpop.permute.xlu0 %640
        %v644 = vadd.f32 %v588, %v639
        %v645 = vadd.f32 %v589, %v641
        %646 = vrot.lane.b32.xlu0 %v588, 92
        %v647 = vpop.permute.xlu0 %646
        %648 = vrot.lane.b32.xlu0 %v589, 92
        %v649 = vpop.permute.xlu0 %648
        %v652 = vadd.f32 %v644, %v647
        %v653 = vadd.f32 %v645, %v649
        %654 = vrot.lane.b32.xlu0 %v588, 74
        %v655 = vpop.permute.xlu0 %654
        %656 = vrot.lane.b32.xlu0 %v589, 74
        %v657 = vpop.permute.xlu0 %656
        %v660 = vadd.f32 %v652, %v655
        %v661 = vadd.f32 %v653, %v657
        %v662 = vand.u32 2147483647, %v660
        %v663 = vand.u32 2147483647, %v661
        %v664 = vadd.f32 %v634, %v662
        %v665 = vadd.f32 %v635, %v663
        %668 = vrot.lane.b32.xlu0 %v597, 110
        %v669 = vpop.permute.xlu0 %668
        %670 = vrot.lane.b32.xlu0 %v598, 110
        %v671 = vpop.permute.xlu0 %670
        %v674 = vadd.f32 %v597, %v669
        %v675 = vadd.f32 %v598, %v671
        %676 = vrot.lane.b32.xlu0 %v597, 92
        %v677 = vpop.permute.xlu0 %676
        %678 = vrot.lane.b32.xlu0 %v598, 92
        %v679 = vpop.permute.xlu0 %678
        %v682 = vadd.f32 %v674, %v677
        %v683 = vadd.f32 %v675, %v679
        %684 = vrot.lane.b32.xlu0 %v597, 74
        %v685 = vpop.permute.xlu0 %684
        %686 = vrot.lane.b32.xlu0 %v598, 74
        %v687 = vpop.permute.xlu0 %686
        %v690 = vadd.f32 %v682, %v685
        %v691 = vadd.f32 %v683, %v687
        %v692 = vand.u32 2147483647, %v690
        %v693 = vand.u32 2147483647, %v691
        %v694 = vadd.f32 %v664, %v692
        %v695 = vadd.f32 %v665, %v693
        %698 = vrot.lane.b32.xlu0 %v606, 110
        %v699 = vpop.permute.xlu0 %698
        %700 = vrot.lane.b32.xlu0 %v607, 110
        %v701 = vpop.permute.xlu0 %700
        %v704 = vadd.f32 %v606, %v699
        %v705 = vadd.f32 %v607, %v701
        %706 = vrot.lane.b32.xlu0 %v606, 92
        %v707 = vpop.permute.xlu0 %706
        %708 = vrot.lane.b32.xlu0 %v607, 92
        %v709 = vpop.permute.xlu0 %708
        %v712 = vadd.f32 %v704, %v707
        %v713 = vadd.f32 %v705, %v709
        %714 = vrot.lane.b32.xlu0 %v606, 74
        %v715 = vpop.permute.xlu0 %714
        %716 = vrot.lane.b32.xlu0 %v607, 74
        %v717 = vpop.permute.xlu0 %716
        %v720 = vadd.f32 %v712, %v715
        %v721 = vadd.f32 %v713, %v717
        %v722 = vand.u32 2147483647, %v720
        %v723 = vand.u32 2147483647, %v721
        %v724 = vadd.f32 %v694, %v722
        %v725 = vadd.f32 %v695, %v723
        %v726 = vmax.f32 %v724, 0.0
        %v727 = vmax.f32 %v725, 0.0
        %v728 = vmin.f32 %v726, 255.0
        %v729 = vmin.f32 %v727, 255.0
        %vm730 = vcmask 130048
        %731 = vst.msk [vmem:[%s136] sm:$0xff] %vm730, %v728
        %732 = vst.msk [vmem:[%s136 + $0x8] sm:$0xff] %vm730, %v729
        %s733 = sand.u32 %s71, 1
        %s734 = scalar_lea.sflag [#allocation3], %s733
        %s735 = sand.u32 %s71, 1
        %s736 = smul.addr %s735, 16
        %s737 = scalar_lea.vmem [#allocation2], %s736
        // Predicated region
        $region29: #{tpu_custom_call.1} parent=27 // pred_check
          %p738 = pneg %p81
        $region30: #{tpu_custom_call.1} parent=27 // pred_check_branch
          %740 = sbr.rel (%p738) target = $region32
        $region31: #{tpu_custom_call.1} parent=27 // pred_region
          %s742 = ssub.s32 256, 256
          %743 = vsyncadd %s734, %s742
          %s744 = smul.addr %s16, 2
          %s745 = smul.addr %s744, 128
          %s746 = scalar_lea.hbm %s2, %s745
          %s747 = sshll.u32 %s737, 4
          %s748 = int_to_ptr.vmem [resolvable:$true] %s747
          %753 = dma.vmem_to_hbm [thread:$0]  %s748, 256, %s746, %s734, 128, 128, 8
        $region32: #{tpu_custom_call.1} parent=27 // pred_fallthru
          _
      $region28: #{tpu_custom_call.1} parent=5 // pred_fallthru
        _
      %p754 = scmp.le.s32.totalorder 2, %s11
      // Predicated region
      $region33: #{tpu_custom_call.1} parent=5 // pred_check
        %p755 = pneg %p754
      $region34: #{tpu_custom_call.1} parent=5 // pred_check_branch
        %757 = sbr.rel (%p755) target = $region36
      $region35: #{tpu_custom_call.1} parent=5 // pred_region
        %s758 = ssub.s32 %s11, 2
        // Predicated region
        $region37: #{tpu_custom_call.1} parent=35 // pred_check
          %p759 = pneg %p87
        $region38: #{tpu_custom_call.1} parent=35 // pred_check_branch
          %761 = sbr.rel (%p759) target = $region40
        $region39: #{tpu_custom_call.1} parent=35 // pred_region
          %s762 = sand.u32 %s72, 1
          %s763 = scalar_lea.sflag [#allocation3], %s762
          %s764 = sand.u32 %s72, 1
          %s765 = smul.addr %s764, 16
          %s766 = scalar_lea.vmem [#allocation2], %s765
          %767 = dma.done %s763, 256
        $region40: #{tpu_custom_call.1} parent=35 // pred_fallthru
          _
      $region36: #{tpu_custom_call.1} parent=5 // pred_fallthru
        _
    $region6: #{tpu_custom_call.1} parent=1 // loop_footer
      %s15 = sadd.s32 1, %s11
    $region7: #{tpu_custom_call.1} parent=1 // loop_footer_branch
      %10 = sbr.rel target = $region3
    $region8: #{tpu_custom_call.1} parent=1 // loop_exit
      _
    %768 = vsyncpa [#allocation3], 1
    %s769 = scalar_lea.sflag [#allocation3], 1
    %770 = vsyncpa %s769, 1

</llo_original>
